<compile_context>
chip_gen: v6e
topology: v6e:2x2x1
jax: 0.10.0
libtpu: 0.0.40
codegen_flags: <defaults>
</compile_context>

<pallas_src>
import functools

import jax
import jax.numpy as jnp
from jax import lax
from jax.experimental import pallas as pl
from jax.experimental.pallas import tpu as pltpu


# ----------------------------------------------------------------------------
# Fused kernel: stand-in backbone (1x1 conv + ReLU + global avg pool, tiled
# over the spatial axis) + classifier epilogue.
# ----------------------------------------------------------------------------
def _transfer_net_kernel(x_ref, wc_ref, bc_ref, w1_ref, b1_ref, w2_ref, b2_ref,
                         out_ref, acc_ref, *, inv_s):
    # x_ref : [tB, C, tS]  f32   spatial tile of the input images
    # wc_ref: [F, C]       bf16  stand-in 1x1-conv weight ([out_ch, in_ch])
    # bc_ref: [F, 1]       f32
    # w1_ref: [F, WIDTH]   bf16  classifier Linear 1 ([in, out] layout)
    # b1_ref: [1, WIDTH]   f32
    # w2_ref: [WIDTH,KPAD] bf16  classifier Linear 2, out dim padded to 128
    # b2_ref: [1, KPAD]    f32
    # out_ref:[tB, KPAD]   f32   lane-dense logits block
    # acc_ref:[F, tB]      f32   pooled-sum accumulator (persists across s)
    s = pl.program_id(1)

    @pl.when(s == 0)
    def _init():
        acc_ref[...] = jnp.zeros_like(acc_ref)

    # ---- stand-in backbone: 1x1 conv + ReLU, partial global-avg-pool sum ----
    wc = wc_ref[...]                      # hoisted once per grid step
    bc = bc_ref[...]
    for b in range(x_ref.shape[0]):       # small static batch-tile loop
        xb = x_ref[b].astype(jnp.bfloat16)                           # [C, tS]
        yb = jnp.dot(wc, xb, preferred_element_type=jnp.float32)     # [F, tS]
        yb = jnp.maximum(yb + bc, 0.0)                               # bias+ReLU (f32)
        acc_ref[:, b:b + 1] += jnp.sum(yb, axis=1, keepdims=True)    # pooled sum

    # ---- classifier epilogue on the last spatial-reduction step ----
    @pl.when(s == pl.num_programs(1) - 1)
    def _finalize():
        # mean = pooled_sum / S, applied exactly once.
        feat_t = (acc_ref[...] * inv_s).astype(jnp.bfloat16)         # [F, tB]
        # h[b, w] = sum_f feat_t[f, b] * w1[f, w]  -- transposed-lhs matmul,
        # so no explicit transpose of the accumulator is needed.
        h = lax.dot_general(feat_t, w1_ref[...],
                            dimension_numbers=(((0,), (0,)), ((), ())),
                            preferred_element_type=jnp.float32)      # [tB, WIDTH]
        h = jnp.maximum(h + b1_ref[...], 0.0)
        # Dropout(0.5) is identity in eval mode.
        logits = jnp.dot(h.astype(jnp.bfloat16), w2_ref[...],
                         preferred_element_type=jnp.float32)         # [tB, KPAD]
        out_ref[...] = (logits + b2_ref[...]).astype(out_ref.dtype)


# ----------------------------------------------------------------------------
# Wrapper: one fused pallas_call over grid = (batch_tiles, spatial_tiles)
# ----------------------------------------------------------------------------
def transfer_net_forward(x_nchw, params, num_class, *, tile_s=None, tile_b=None):
    B, C, H, W = x_nchw.shape
    S = H * W
    x_bcs = x_nchw.reshape(B, C, S)       # free reshape; no HBM transpose pass

    F, c_w = params["wc"].shape
    assert c_w == C
    f_w1, WIDTH = params["w1"].shape
    assert f_w1 == F
    w_w2, KPAD = params["w2"].shape
    assert w_w2 == WIDTH and KPAD % 128 == 0 and num_class <= KPAD

    if tile_b is None:
        tile_b = B if B <= 8 else 8
    assert B % tile_b == 0, "batch size must be divisible by the batch tile"
    if tile_s is None:
        tile_s = S
        for cand in (2048, 1024, 512, 256, 128):
            if S % cand == 0:
                tile_s = cand
                break
    # All spatial tiles are full, so the pooled mean divides by the true S
    # (no ragged-tile masking needed).
    assert S % tile_s == 0 and (tile_s == S or tile_s % 128 == 0)

    grid = (B // tile_b, S // tile_s)
    kernel = functools.partial(_transfer_net_kernel, inv_s=1.0 / S)

    out = pl.pallas_call(
        kernel,
        out_shape=jax.ShapeDtypeStruct((B, KPAD), jnp.float32),
        grid_spec=pltpu.PrefetchScalarGridSpec(
            num_scalar_prefetch=0,
            grid=grid,
            in_specs=[
                pl.BlockSpec((tile_b, C, tile_s), lambda b, s: (b, 0, s)),  # x
                # Weight/bias blocks have constant index maps -> DMA'd once,
                # then resident in VMEM for the whole grid.
                pl.BlockSpec((F, C), lambda b, s: (0, 0)),          # wc
                pl.BlockSpec((F, 1), lambda b, s: (0, 0)),          # bc
                pl.BlockSpec((F, WIDTH), lambda b, s: (0, 0)),      # w1
                pl.BlockSpec((1, WIDTH), lambda b, s: (0, 0)),      # b1
                pl.BlockSpec((WIDTH, KPAD), lambda b, s: (0, 0)),   # w2
                pl.BlockSpec((1, KPAD), lambda b, s: (0, 0)),       # b2
            ],
            out_specs=pl.BlockSpec((tile_b, KPAD), lambda b, s: (b, 0)),
            scratch_shapes=[pltpu.VMEM((F, tile_b), jnp.float32)],
        ),
        compiler_params=pltpu.CompilerParams(
            dimension_semantics=("parallel", "arbitrary")),
    )(x_bcs, params["wc"], params["bc"], params["w1"], params["b1"],
      params["w2"], params["b2"])
    return out[:, :num_class]


# ----------------------------------------------------------------------------
# Parameters (classifier init mirrors PyTorch: weight ~ N(0, 0.01), bias = 0.0)
# ----------------------------------------------------------------------------
def init_params(key, in_ch, feat_dim, width, num_class):
    k_pad = ((num_class + 127) // 128) * 128     # lane-dense padded class dim
    k_bb, k_w1, k_w2 = jax.random.split(key, 3)
    # stand-in backbone 1x1 conv weights ([out_ch, in_ch], deterministic)
    wc = (0.05 * jax.random.normal(k_bb, (feat_dim, in_ch), jnp.float32)
          ).astype(jnp.bfloat16)
    bc = jnp.zeros((feat_dim, 1), jnp.float32)
    # classifier Linear weights stored as [in, out] (numerically equivalent to
    # PyTorch's [out, in] + transpose at apply time), bf16 for half the DMA.
    w1 = (0.01 * jax.random.normal(k_w1, (feat_dim, width), jnp.float32)
          ).astype(jnp.bfloat16)
    b1 = jnp.zeros((1, width), jnp.float32)
    w2_core = 0.01 * jax.random.normal(k_w2, (width, num_class), jnp.float32)
    w2 = jnp.zeros((width, k_pad), jnp.float32).at[:, :num_class].set(w2_core)
    w2 = w2.astype(jnp.bfloat16)
    b2 = jnp.zeros((1, k_pad), jnp.float32)
    return {"wc": wc, "bc": bc, "w1": w1, "b1": b1, "w2": w2, "b2": b2}


# ----------------------------------------------------------------------------
# Pure-JAX reference (same bf16/f32 precision choices) for correctness check
# ----------------------------------------------------------------------------
def transfer_net_reference(x_nchw, params, num_class):
    B, C, H, W = x_nchw.shape
    x = x_nchw.reshape(B, C, H * W).astype(jnp.bfloat16)            # [B, C, S]
    y = jnp.einsum("bcs,fc->bfs", x, params["wc"],
                   preferred_element_type=jnp.float32)               # [B, F, S]
    y = jnp.maximum(y + params["bc"][None, :, :], 0.0)
    feat = jnp.mean(y, axis=-1).astype(jnp.bfloat16)                 # [B, F]
    h = jnp.dot(feat, params["w1"],
                preferred_element_type=jnp.float32) + params["b1"]
    h = jnp.maximum(h, 0.0).astype(jnp.bfloat16)
    logits = jnp.dot(h, params["w2"],
                     preferred_element_type=jnp.float32) + params["b2"]
    return logits[:, :num_class]


if __name__ == "__main__":
    import numpy as np

    # Small shapes consistent with the module's forward: NCHW images,
    # backbone feature dim (stand-in for 2048), classifier hidden width
    # (stand-in for 1024), num_class.
    B, C, H, W = 2, 4, 16, 16
    FEAT_DIM = 32
    WIDTH = 64
    NUM_CLASS = 8

    key = jax.random.PRNGKey(0)
    k_x, k_p = jax.random.split(key)
    x = jax.random.normal(k_x, (B, C, H, W), dtype=jnp.float32)
    params = init_params(k_p, C, FEAT_DIM, WIDTH, NUM_CLASS)

    # tile_s=128 -> two spatial-reduction grid steps, exercising the
    # accumulator init/accumulate/finalize path.
    logits = transfer_net_forward(x, params, NUM_CLASS, tile_s=128)
    logits = jax.block_until_ready(logits)

    ref = transfer_net_reference(x, params, NUM_CLASS)
    np.testing.assert_allclose(np.asarray(logits), np.asarray(ref),
                               rtol=5e-2, atol=1e-5)

    assert logits.shape == (B, NUM_CLASS)
    assert logits.dtype == jnp.float32
    print("KERNEL_OK")
</pallas_src>

<mosaic_0001>
module attributes {stable_mosaic.version = 11 : i64} {
  func.func @_transfer_net_kernel(%arg0: i32, %arg1: i32, %arg2: memref<2x4x128xf32, #tpu.memory_space<vmem>>, %arg3: memref<32x4xbf16, #tpu.memory_space<vmem>>, %arg4: memref<32x1xf32, #tpu.memory_space<vmem>>, %arg5: memref<32x64xbf16, #tpu.memory_space<vmem>>, %arg6: memref<1x64xf32, #tpu.memory_space<vmem>>, %arg7: memref<64x128xbf16, #tpu.memory_space<vmem>>, %arg8: memref<1x128xf32, #tpu.memory_space<vmem>>, %arg9: memref<2x128xf32, #tpu.memory_space<vmem>>, %arg10: memref<32x2xf32, #tpu.memory_space<vmem>>) attributes {dimension_semantics = [#tpu.dimension_semantics<parallel>, #tpu.dimension_semantics<arbitrary>], iteration_bounds = array<i64: 1, 2>, scalar_prefetch = 0 : i64, scratch_operands = 1 : i64, tpu.core_type = #tpu.core_type<tc>, window_params = [{transform_indices = @transform_0, window_bounds = array<i64: 2, 4, 128>}, {pipeline_mode = #tpu.pipeline_mode<synchronous>, transform_indices = @transform_1, window_bounds = array<i64: 32, 4>}, {pipeline_mode = #tpu.pipeline_mode<synchronous>, transform_indices = @transform_2, window_bounds = array<i64: 32, 1>}, {pipeline_mode = #tpu.pipeline_mode<synchronous>, transform_indices = @transform_3, window_bounds = array<i64: 32, 64>}, {pipeline_mode = #tpu.pipeline_mode<synchronous>, transform_indices = @transform_4, window_bounds = array<i64: 1, 64>}, {pipeline_mode = #tpu.pipeline_mode<synchronous>, transform_indices = @transform_5, window_bounds = array<i64: 64, 128>}, {pipeline_mode = #tpu.pipeline_mode<synchronous>, transform_indices = @transform_6, window_bounds = array<i64: 1, 128>}, {transform_indices = @transform_7, window_bounds = array<i64: 2, 128>}]} {
    %c0_i32 = arith.constant 0 : i32
    %0 = arith.cmpi eq, %arg1, %c0_i32 : i32
    %1 = arith.extui %0 : i1 to i32
    %c0_i32_0 = arith.constant 0 : i32
    %2 = arith.cmpi ne, %1, %c0_i32_0 : i32
    scf.if %2 {
      %cst_23 = arith.constant 0.000000e+00 : f32
      %34 = vector.broadcast %cst_23 : f32 to vector<32x2xf32>
      %c0_24 = arith.constant 0 : index
      %c0_25 = arith.constant 0 : index
      %35 = vector.load %arg10[%c0_24, %c0_25] : memref<32x2xf32, #tpu.memory_space<vmem>>, vector<32x2xf32>
      tpu.vector_store %arg10[%c0_24, %c0_25], %34 {strides = array<i32>} : memref<32x2xf32, #tpu.memory_space<vmem>>, vector<32x2xf32>,
    } else {
    }
    %c0 = arith.constant 0 : index
    %c0_1 = arith.constant 0 : index
    %3 = vector.load %arg3[%c0, %c0_1] : memref<32x4xbf16, #tpu.memory_space<vmem>>, vector<32x4xbf16>
    %c0_2 = arith.constant 0 : index
    %c0_3 = arith.constant 0 : index
    %4 = vector.load %arg4[%c0_2, %c0_3] : memref<32x1xf32, #tpu.memory_space<vmem>>, vector<32x1xf32>
    %c0_4 = arith.constant 0 : index
    %c0_5 = arith.constant 0 : index
    %c0_6 = arith.constant 0 : index
    %5 = vector.load %arg2[%c0_4, %c0_5, %c0_6] : memref<2x4x128xf32, #tpu.memory_space<vmem>>, vector<1x4x128xf32>
    %6 = vector.shape_cast %5 : vector<1x4x128xf32> to vector<4x128xf32>
    %7 = arith.truncf %6 : vector<4x128xf32> to vector<4x128xbf16>
    %cst = arith.constant dense<0.000000e+00> : vector<32x128xf32>
    %8 = tpu.matmul %3, %7, %cst {dimension_numbers = #tpu.dot_dimension_numbers<[1], [0], [0], [1], [0, 0, 1, 1], [], []>} : vector<32x4xbf16>, vector<4x128xbf16>, vector<32x128xf32> -> vector<32x128xf32>
    %9 = vector.broadcast %4 : vector<32x1xf32> to vector<32x128xf32>
    %10 = arith.addf %8, %9 : vector<32x128xf32>
    %cst_7 = arith.constant 0.000000e+00 : f32
    %11 = vector.broadcast %cst_7 : f32 to vector<32x128xf32>
    %12 = arith.maximumf %10, %11 : vector<32x128xf32>
    %c0_8 = arith.constant 0 : index
    %c0_9 = arith.constant 0 : index
    %13 = vector.load %arg10[%c0_8, %c0_9] : memref<32x2xf32, #tpu.memory_space<vmem>>, vector<32x1xf32>
    %cst_10 = arith.constant dense<0.000000e+00> : vector<32xf32>
    %14 = vector.multi_reduction <add>, %12, %cst_10 [1] : vector<32x128xf32> to vector<32xf32>
    %15 = vector.shape_cast %14 : vector<32xf32> to vector<32x1xf32>
    %16 = arith.addf %13, %15 : vector<32x1xf32>
    %c0_11 = arith.constant 0 : index
    %c0_12 = arith.constant 0 : index
    %17 = vector.load %arg10[%c0_11, %c0_12] : memref<32x2xf32, #tpu.memory_space<vmem>>, vector<32x1xf32>
    tpu.vector_store %arg10[%c0_11, %c0_12], %16 {strides = array<i32>} : memref<32x2xf32, #tpu.memory_space<vmem>>, vector<32x1xf32>,
    %c1 = arith.constant 1 : index
    %c0_13 = arith.constant 0 : index
    %c0_14 = arith.constant 0 : index
    %18 = vector.load %arg2[%c1, %c0_13, %c0_14] : memref<2x4x128xf32, #tpu.memory_space<vmem>>, vector<1x4x128xf32>
    %19 = vector.shape_cast %18 : vector<1x4x128xf32> to vector<4x128xf32>
    %20 = arith.truncf %19 : vector<4x128xf32> to vector<4x128xbf16>
    %cst_15 = arith.constant dense<0.000000e+00> : vector<32x128xf32>
    %21 = tpu.matmul %3, %20, %cst_15 {dimension_numbers = #tpu.dot_dimension_numbers<[1], [0], [0], [1], [0, 0, 1, 1], [], []>} : vector<32x4xbf16>, vector<4x128xbf16>, vector<32x128xf32> -> vector<32x128xf32>
    %22 = vector.broadcast %4 : vector<32x1xf32> to vector<32x128xf32>
    %23 = arith.addf %21, %22 : vector<32x128xf32>
    %cst_16 = arith.constant 0.000000e+00 : f32
    %24 = vector.broadcast %cst_16 : f32 to vector<32x128xf32>
    %25 = arith.maximumf %23, %24 : vector<32x128xf32>
    %c0_17 = arith.constant 0 : index
    %c1_18 = arith.constant 1 : index
    %26 = vector.load %arg10[%c0_17, %c1_18] : memref<32x2xf32, #tpu.memory_space<vmem>>, vector<32x1xf32>
    %cst_19 = arith.constant dense<0.000000e+00> : vector<32xf32>
    %27 = vector.multi_reduction <add>, %25, %cst_19 [1] : vector<32x128xf32> to vector<32xf32>
    %28 = vector.shape_cast %27 : vector<32xf32> to vector<32x1xf32>
    %29 = arith.addf %26, %28 : vector<32x1xf32>
    %c0_20 = arith.constant 0 : index
    %c1_21 = arith.constant 1 : index
    %30 = vector.load %arg10[%c0_20, %c1_21] : memref<32x2xf32, #tpu.memory_space<vmem>>, vector<32x1xf32>
    tpu.vector_store %arg10[%c0_20, %c1_21], %29 {strides = array<i32>} : memref<32x2xf32, #tpu.memory_space<vmem>>, vector<32x1xf32>,
    %c1_i32 = arith.constant 1 : i32
    %31 = arith.cmpi eq, %arg1, %c1_i32 : i32
    %32 = arith.extui %31 : i1 to i32
    %c0_i32_22 = arith.constant 0 : i32
    %33 = arith.cmpi ne, %32, %c0_i32_22 : i32
    scf.if %33 {
      %c0_23 = arith.constant 0 : index
      %c0_24 = arith.constant 0 : index
      %34 = vector.load %arg10[%c0_23, %c0_24] : memref<32x2xf32, #tpu.memory_space<vmem>>, vector<32x2xf32>
      %cst_25 = arith.constant 3.906250e-03 : f32
      %35 = vector.broadcast %cst_25 : f32 to vector<32x2xf32>
      %36 = arith.mulf %34, %35 : vector<32x2xf32>
      %37 = arith.truncf %36 : vector<32x2xf32> to vector<32x2xbf16>
      %c0_26 = arith.constant 0 : index
      %c0_27 = arith.constant 0 : index
      %38 = vector.load %arg5[%c0_26, %c0_27] : memref<32x64xbf16, #tpu.memory_space<vmem>>, vector<32x64xbf16>
      %cst_28 = arith.constant dense<0.000000e+00> : vector<2x64xf32>
      %39 = tpu.matmul %37, %38, %cst_28 {dimension_numbers = #tpu.dot_dimension_numbers<[0], [0], [1], [1], [0, 1, 1, 1], [], []>} : vector<32x2xbf16>, vector<32x64xbf16>, vector<2x64xf32> -> vector<2x64xf32>
      %c0_29 = arith.constant 0 : index
      %c0_30 = arith.constant 0 : index
      %40 = vector.load %arg6[%c0_29, %c0_30] : memref<1x64xf32, #tpu.memory_space<vmem>>, vector<1x64xf32>
      %41 = vector.broadcast %40 : vector<1x64xf32> to vector<2x64xf32>
      %42 = arith.addf %39, %41 : vector<2x64xf32>
      %cst_31 = arith.constant 0.000000e+00 : f32
      %43 = vector.broadcast %cst_31 : f32 to vector<2x64xf32>
      %44 = arith.maximumf %42, %43 : vector<2x64xf32>
      %45 = arith.truncf %44 : vector<2x64xf32> to vector<2x64xbf16>
      %c0_32 = arith.constant 0 : index
      %c0_33 = arith.constant 0 : index
      %46 = vector.load %arg7[%c0_32, %c0_33] : memref<64x128xbf16, #tpu.memory_space<vmem>>, vector<64x128xbf16>
      %cst_34 = arith.constant dense<0.000000e+00> : vector<2x128xf32>
      %47 = tpu.matmul %45, %46, %cst_34 {dimension_numbers = #tpu.dot_dimension_numbers<[1], [0], [0], [1], [0, 0, 1, 1], [], []>} : vector<2x64xbf16>, vector<64x128xbf16>, vector<2x128xf32> -> vector<2x128xf32>
      %c0_35 = arith.constant 0 : index
      %c0_36 = arith.constant 0 : index
      %48 = vector.load %arg8[%c0_35, %c0_36] : memref<1x128xf32, #tpu.memory_space<vmem>>, vector<1x128xf32>
      %49 = vector.broadcast %48 : vector<1x128xf32> to vector<2x128xf32>
      %50 = arith.addf %47, %49 : vector<2x128xf32>
      %c0_37 = arith.constant 0 : index
      %c0_38 = arith.constant 0 : index
      %51 = vector.load %arg9[%c0_37, %c0_38] : memref<2x128xf32, #tpu.memory_space<vmem>>, vector<2x128xf32>
      tpu.vector_store %arg9[%c0_37, %c0_38], %50 {strides = array<i32>} : memref<2x128xf32, #tpu.memory_space<vmem>>, vector<2x128xf32>,
    } else {
    }
    return
  }
  func.func @transform_0(%arg0: i32, %arg1: i32) -> (i32, i32, i32) {
    %c0_i32 = arith.constant 0 : i32
    %c0_i32_0 = arith.constant 0 : i32
    return %arg0, %c0_i32, %arg1 : i32, i32, i32
  }
  func.func @transform_1(%arg0: i32, %arg1: i32) -> (i32, i32) {
    %c0_i32 = arith.constant 0 : i32
    %c0_i32_0 = arith.constant 0 : i32
    %c0_i32_1 = arith.constant 0 : i32
    return %c0_i32, %c0_i32_0 : i32, i32
  }
  func.func @transform_2(%arg0: i32, %arg1: i32) -> (i32, i32) {
    %c0_i32 = arith.constant 0 : i32
    %c0_i32_0 = arith.constant 0 : i32
    %c0_i32_1 = arith.constant 0 : i32
    return %c0_i32, %c0_i32_0 : i32, i32
  }
  func.func @transform_3(%arg0: i32, %arg1: i32) -> (i32, i32) {
    %c0_i32 = arith.constant 0 : i32
    %c0_i32_0 = arith.constant 0 : i32
    %c0_i32_1 = arith.constant 0 : i32
    return %c0_i32, %c0_i32_0 : i32, i32
  }
  func.func @transform_4(%arg0: i32, %arg1: i32) -> (i32, i32) {
    %c0_i32 = arith.constant 0 : i32
    %c0_i32_0 = arith.constant 0 : i32
    %c0_i32_1 = arith.constant 0 : i32
    return %c0_i32, %c0_i32_0 : i32, i32
  }
  func.func @transform_5(%arg0: i32, %arg1: i32) -> (i32, i32) {
    %c0_i32 = arith.constant 0 : i32
    %c0_i32_0 = arith.constant 0 : i32
    %c0_i32_1 = arith.constant 0 : i32
    return %c0_i32, %c0_i32_0 : i32, i32
  }
  func.func @transform_6(%arg0: i32, %arg1: i32) -> (i32, i32) {
    %c0_i32 = arith.constant 0 : i32
    %c0_i32_0 = arith.constant 0 : i32
    %c0_i32_1 = arith.constant 0 : i32
    return %c0_i32, %c0_i32_0 : i32, i32
  }
  func.func @transform_7(%arg0: i32, %arg1: i32) -> (i32, i32) {
    %c0_i32 = arith.constant 0 : i32
    %c0_i32_0 = arith.constant 0 : i32
    return %arg0, %c0_i32 : i32, i32
  }
}

</mosaic_0001>

<llo_original>
// kernel: tpu_custom_call.1
$region0: #{tpu_custom_call.1}
  #allocation0 [shape = 'u32[]', space=smem, size = 0x4, offset = 0x4, fixed_abs, tag = 'smem constant byte address 0x4 - core index']
  #allocation1 [shape = 'u32[144,128]{1,0:T(1,128)}', space=vmem, size = 0x12000, scoped, tag = 'internal scratch']
  #allocation2 [shape = 'f32[32,2]{1,0:T(8,128)}', space=vmem, size = 0x4000, scoped, tag = 'scratch operand']
  %s0 = inlined_call_operand.vmem [shape: f32[2,4,256], index: 0, kind: input, shape index: {}]
  %s1 = inlined_call_operand.vmem [shape: bf16[32,4], index: 1, kind: input, shape index: {}]
  %s2 = inlined_call_operand.vmem [shape: f32[32,1], index: 2, kind: input, shape index: {}]
  %s3 = inlined_call_operand.hbm [shape: bf16[32,64], index: 3, kind: input, shape index: {}]
  %s4 = inlined_call_operand.vmem [shape: f32[1,64], index: 4, kind: input, shape index: {}]
  %s5 = inlined_call_operand.vmem [shape: bf16[64,128], index: 5, kind: input, shape index: {}]
  %s6 = inlined_call_operand.vmem [shape: f32[1,128], index: 6, kind: input, shape index: {}]
  %s7 = inlined_call_operand.hbm [shape: f32[2,128], index: 7, kind: output, shape index: {}]
  %s8 = sld [smem:[#allocation0]]
  $region114: #{tpu_custom_call.1} parent=0
    _
  %s10 = ssub.s32 1, %s8
  %s11 = scalar_select 0, %s10, %s8
  $region1: #{tpu_custom_call.1} parent=0
    #allocation3 [shape = 'u8[8192]{0}', space=vmem, size = 0x2000, scoped, tag = 'input window, operand 0']
    #allocation4 [shape = 'u8[8192]{0}', space=vmem, size = 0x2000, scoped, tag = 'input window, operand 3, single buffered']
    #allocation5 [shape = 's32[2]{0}', space=sflag, size = 0x8, scoped, tag = 'scoped memory for tpu_custom_call.1']
    #allocation6 [shape = 's32[2]{0}', space=sflag, size = 0x8, scoped, tag = 'scoped memory for tpu_custom_call.1']
    #allocation7 [shape = 'u8[1024]{0}', space=vmem, size = 0x400, scoped, tag = 'output window, operand 0, single buffered']
    %12 = vsyncpa [#allocation5], 0
    %13 = vsyncpa [#allocation6], 0
    loop: start=0, step=1, limit=4
    $region2: #{tpu_custom_call.1} parent=1 // loop_pre_header
      _
    $region3: #{tpu_custom_call.1} parent=1 // loop_header
      %s15 = sphi 0, %s19
      %p16 = scmp.ge.s32.totalorder %s15, 4
      %s22 = sphi 0, %s34
      %s23 = sphi 0, %s30
      %s24 = sphi 0, %s22
      %s25 = sphi 0, %s23
      %s26 = sphi 0, %s24
      %s27 = sphi 0, %s25
      %s39 = sphi 0, %s41
      %s42 = sphi 0, %s39
      %s43 = sphi 0, %s42
      %s59 = sphi 0, %s43
      %s63 = sphi 0, %s63
      %s65 = sphi 0, %s63
      %s66 = sphi 0, %s65
      %s80 = sphi 0, %s66
      %s84 = sphi 0, %s84
      %s86 = sphi 0, %s84
      %s87 = sphi 0, %s86
      %s101 = sphi 0, %s87
      %s105 = sphi 0, %s105
      %s107 = sphi 0, %s105
      %s108 = sphi 0, %s107
      %s122 = sphi 0, %s108
      %s126 = sphi 0, %s126
      %s128 = sphi 0, %s126
      %s129 = sphi 0, %s128
      %s143 = sphi 0, %s129
      %s147 = sphi 0, %s147
      %s149 = sphi 0, %s147
      %s150 = sphi 0, %s149
      %s164 = sphi 0, %s150
      %s168 = sphi 0, %s168
      %s170 = sphi 0, %s168
      %s171 = sphi 0, %s170
      %s185 = sphi 0, %s171
      %s191 = sphi 0, %s193
      %s194 = sphi 0, %s191
      %s195 = sphi 0, %s194
      %s211 = sphi 0, %s195
    $region4: #{tpu_custom_call.1} parent=1 // loop_header_branch
      %18 = sbr.rel (%p16) target = $region8
    $region5: #{tpu_custom_call.1} parent=1 // loop_body
      %s20 = ssub.s32 %s15, 1
      %s21 = ssub.s32 %s15, 2
      %s28 = sadd.s32 1, %s23
      %p29 = scmp.ge.s32.totalorder %s28, 2
      %s30 = scalar_select %p29, 0, %s28
      %s31 = sadd.s32 1, %s22
      %s32 = scalar_select %p29, %s31, %s22
      %p33 = scmp.ge.s32.totalorder %s32, 1
      %s34 = scalar_select %p33, 0, %s32
      %s35 = ssub.s32 %s22, %s34
      %s36 = ssub.s32 %s23, %s30
      %s37 = sor.u32 %s35, %s36
      %p38 = scmp.eq.s32.totalorder %s37, 0
      %s40 = sadd.s32 %s39, 1
      %s41 = scalar_select %p38, %s39, %s40
      %p44 = pneg %p38
      %p45 = scmp.eq.s32.totalorder %s15, 1
      %p46 = por %p44, %p45
      %p47 = scmp.ne.s32.totalorder %s39, %s42
      %p48 = scmp.eq.s32.totalorder %s15, 0
      %p49 = por %p47, %p48
      %p50 = scmp.ne.s32.totalorder %s39, %s42
      %p51 = scmp.eq.s32.totalorder %s20, 1
      %p52 = por %p50, %p51
      %p53 = scmp.ne.s32.totalorder %s42, %s43
      %p54 = scmp.eq.s32.totalorder %s20, 0
      %p55 = por %p53, %p54
      %p56 = scmp.ne.s32.totalorder %s42, %s43
      %p57 = scmp.eq.s32.totalorder %s21, 1
      %p58 = por %p56, %p57
      %p60 = scmp.ne.s32.totalorder %s43, %s59
      %p61 = scmp.eq.s32.totalorder %s21, 0
      %p62 = por %p60, %p61
      %s64 = sadd.s32 %s63, 1
      %p67 = scmp.eq.s32.totalorder %s15, 1
      %p68 = scmp.ne.s32.totalorder %s63, %s65
      %p69 = scmp.eq.s32.totalorder %s15, 0
      %p70 = por %p68, %p69
      %p71 = scmp.ne.s32.totalorder %s63, %s65
      %p72 = scmp.eq.s32.totalorder %s20, 1
      %p73 = por %p71, %p72
      %p74 = scmp.ne.s32.totalorder %s65, %s66
      %p75 = scmp.eq.s32.totalorder %s20, 0
      %p76 = por %p74, %p75
      %p77 = scmp.ne.s32.totalorder %s65, %s66
      %p78 = scmp.eq.s32.totalorder %s21, 1
      %p79 = por %p77, %p78
      %p81 = scmp.ne.s32.totalorder %s66, %s80
      %p82 = scmp.eq.s32.totalorder %s21, 0
      %p83 = por %p81, %p82
      %s85 = sadd.s32 %s84, 1
      %p88 = scmp.eq.s32.totalorder %s15, 1
      %p89 = scmp.ne.s32.totalorder %s84, %s86
      %p90 = scmp.eq.s32.totalorder %s15, 0
      %p91 = por %p89, %p90
      %p92 = scmp.ne.s32.totalorder %s84, %s86
      %p93 = scmp.eq.s32.totalorder %s20, 1
      %p94 = por %p92, %p93
      %p95 = scmp.ne.s32.totalorder %s86, %s87
      %p96 = scmp.eq.s32.totalorder %s20, 0
      %p97 = por %p95, %p96
      %p98 = scmp.ne.s32.totalorder %s86, %s87
      %p99 = scmp.eq.s32.totalorder %s21, 1
      %p100 = por %p98, %p99
      %p102 = scmp.ne.s32.totalorder %s87, %s101
      %p103 = scmp.eq.s32.totalorder %s21, 0
      %p104 = por %p102, %p103
      %s106 = sadd.s32 %s105, 1
      %p109 = scmp.eq.s32.totalorder %s15, 1
      %p110 = scmp.ne.s32.totalorder %s105, %s107
      %p111 = scmp.eq.s32.totalorder %s15, 0
      %p112 = por %p110, %p111
      %p113 = scmp.ne.s32.totalorder %s105, %s107
      %p114 = scmp.eq.s32.totalorder %s20, 1
      %p115 = por %p113, %p114
      %p116 = scmp.ne.s32.totalorder %s107, %s108
      %p117 = scmp.eq.s32.totalorder %s20, 0
      %p118 = por %p116, %p117
      %p119 = scmp.ne.s32.totalorder %s107, %s108
      %p120 = scmp.eq.s32.totalorder %s21, 1
      %p121 = por %p119, %p120
      %p123 = scmp.ne.s32.totalorder %s108, %s122
      %p124 = scmp.eq.s32.totalorder %s21, 0
      %p125 = por %p123, %p124
      %s127 = sadd.s32 %s126, 1
      %p130 = scmp.eq.s32.totalorder %s15, 1
      %p131 = scmp.ne.s32.totalorder %s126, %s128
      %p132 = scmp.eq.s32.totalorder %s15, 0
      %p133 = por %p131, %p132
      %p134 = scmp.ne.s32.totalorder %s126, %s128
      %p135 = scmp.eq.s32.totalorder %s20, 1
      %p136 = por %p134, %p135
      %p137 = scmp.ne.s32.totalorder %s128, %s129
      %p138 = scmp.eq.s32.totalorder %s20, 0
      %p139 = por %p137, %p138
      %p140 = scmp.ne.s32.totalorder %s128, %s129
      %p141 = scmp.eq.s32.totalorder %s21, 1
      %p142 = por %p140, %p141
      %p144 = scmp.ne.s32.totalorder %s129, %s143
      %p145 = scmp.eq.s32.totalorder %s21, 0
      %p146 = por %p144, %p145
      %s148 = sadd.s32 %s147, 1
      %p151 = scmp.eq.s32.totalorder %s15, 1
      %p152 = scmp.ne.s32.totalorder %s147, %s149
      %p153 = scmp.eq.s32.totalorder %s15, 0
      %p154 = por %p152, %p153
      %p155 = scmp.ne.s32.totalorder %s147, %s149
      %p156 = scmp.eq.s32.totalorder %s20, 1
      %p157 = por %p155, %p156
      %p158 = scmp.ne.s32.totalorder %s149, %s150
      %p159 = scmp.eq.s32.totalorder %s20, 0
      %p160 = por %p158, %p159
      %p161 = scmp.ne.s32.totalorder %s149, %s150
      %p162 = scmp.eq.s32.totalorder %s21, 1
      %p163 = por %p161, %p162
      %p165 = scmp.ne.s32.totalorder %s150, %s164
      %p166 = scmp.eq.s32.totalorder %s21, 0
      %p167 = por %p165, %p166
      %s169 = sadd.s32 %s168, 1
      %p172 = scmp.eq.s32.totalorder %s15, 1
      %p173 = scmp.ne.s32.totalorder %s168, %s170
      %p174 = scmp.eq.s32.totalorder %s15, 0
      %p175 = por %p173, %p174
      %p176 = scmp.ne.s32.totalorder %s168, %s170
      %p177 = scmp.eq.s32.totalorder %s20, 1
      %p178 = por %p176, %p177
      %p179 = scmp.ne.s32.totalorder %s170, %s171
      %p180 = scmp.eq.s32.totalorder %s20, 0
      %p181 = por %p179, %p180
      %p182 = scmp.ne.s32.totalorder %s170, %s171
      %p183 = scmp.eq.s32.totalorder %s21, 1
      %p184 = por %p182, %p183
      %p186 = scmp.ne.s32.totalorder %s171, %s185
      %p187 = scmp.eq.s32.totalorder %s21, 0
      %p188 = por %p186, %p187
      %s189 = ssub.s32 %s22, %s34
      %p190 = scmp.eq.s32.totalorder %s189, 0
      %s192 = sadd.s32 %s191, 1
      %s193 = scalar_select %p190, %s191, %s192
      %p196 = pneg %p190
      %p197 = scmp.eq.s32.totalorder %s15, 1
      %p198 = por %p196, %p197
      %p199 = scmp.ne.s32.totalorder %s191, %s194
      %p200 = scmp.eq.s32.totalorder %s15, 0
      %p201 = por %p199, %p200
      %p202 = scmp.ne.s32.totalorder %s191, %s194
      %p203 = scmp.eq.s32.totalorder %s20, 1
      %p204 = por %p202, %p203
      %p205 = scmp.ne.s32.totalorder %s194, %s195
      %p206 = scmp.eq.s32.totalorder %s20, 0
      %p207 = por %p205, %p206
      %p208 = scmp.ne.s32.totalorder %s194, %s195
      %p209 = scmp.eq.s32.totalorder %s21, 1
      %p210 = por %p208, %p209
      %p212 = scmp.ne.s32.totalorder %s195, %s211
      %p213 = scmp.eq.s32.totalorder %s21, 0
      %p214 = por %p212, %p213
      %p215 = scmp.le.s32.totalorder 1, %s15
      %p216 = scmp.lt.s32.totalorder %s15, 3
      %p217 = pnand %p215, %p216
      %p218 = pneg %p217
      // Predicated region
      $region9: #{tpu_custom_call.1} parent=5 // pred_check
        _
      $region10: #{tpu_custom_call.1} parent=5 // pred_check_branch
        %220 = sbr.rel (%p217) target = $region12
      $region11: #{tpu_custom_call.1} parent=5 // pred_region
        %s221 = ssub.s32 %s15, 1
        // Predicated region
        $region13: #{tpu_custom_call.1} parent=11 // pred_check
          %p222 = pneg %p76
        $region14: #{tpu_custom_call.1} parent=11 // pred_check_branch
          %224 = sbr.rel (%p222) target = $region16
        $region15: #{tpu_custom_call.1} parent=11 // pred_region
          _
        $region16: #{tpu_custom_call.1} parent=11 // pred_fallthru
          _
        // Predicated region
        $region17: #{tpu_custom_call.1} parent=11 // pred_check
          %p225 = pneg %p97
        $region18: #{tpu_custom_call.1} parent=11 // pred_check_branch
          %227 = sbr.rel (%p225) target = $region20
        $region19: #{tpu_custom_call.1} parent=11 // pred_region
          _
        $region20: #{tpu_custom_call.1} parent=11 // pred_fallthru
          _
        // Predicated region
        $region21: #{tpu_custom_call.1} parent=11 // pred_check
          %p228 = pneg %p118
        $region22: #{tpu_custom_call.1} parent=11 // pred_check_branch
          %230 = sbr.rel (%p228) target = $region24
        $region23: #{tpu_custom_call.1} parent=11 // pred_region
          %s232 = ssub.s32 256, 256
          %233 = vsyncadd [#allocation5], %s232
          %s234 = sshll.u32 [#allocation4], 4
          %s235 = int_to_ptr.vmem [resolvable:$true] %s234
          %240 = dma.hbm_to_vmem [thread:$0]  %s3, 256, %s235, [#allocation5], 64, 64, 4
        $region24: #{tpu_custom_call.1} parent=11 // pred_fallthru
          _
        // Predicated region
        $region25: #{tpu_custom_call.1} parent=11 // pred_check
          %p241 = pneg %p139
        $region26: #{tpu_custom_call.1} parent=11 // pred_check_branch
          %243 = sbr.rel (%p241) target = $region28
        $region27: #{tpu_custom_call.1} parent=11 // pred_region
          _
        $region28: #{tpu_custom_call.1} parent=11 // pred_fallthru
          _
        // Predicated region
        $region29: #{tpu_custom_call.1} parent=11 // pred_check
          %p244 = pneg %p160
        $region30: #{tpu_custom_call.1} parent=11 // pred_check_branch
          %246 = sbr.rel (%p244) target = $region32
        $region31: #{tpu_custom_call.1} parent=11 // pred_region
          _
        $region32: #{tpu_custom_call.1} parent=11 // pred_fallthru
          _
        // Predicated region
        $region33: #{tpu_custom_call.1} parent=11 // pred_check
          %p247 = pneg %p181
        $region34: #{tpu_custom_call.1} parent=11 // pred_check_branch
          %249 = sbr.rel (%p247) target = $region36
        $region35: #{tpu_custom_call.1} parent=11 // pred_region
          _
        $region36: #{tpu_custom_call.1} parent=11 // pred_fallthru
          _
      $region12: #{tpu_custom_call.1} parent=5 // pred_fallthru
        _
      %p250 = scmp.lt.s32.totalorder %s15, 2
      // Predicated region
      $region37: #{tpu_custom_call.1} parent=5 // pred_check
        %p251 = pneg %p250
      $region38: #{tpu_custom_call.1} parent=5 // pred_check_branch
        %253 = sbr.rel (%p251) target = $region40
      $region39: #{tpu_custom_call.1} parent=5 // pred_region
        // Predicated region
        $region41: #{tpu_custom_call.1} parent=39 // pred_check
          %p254 = pneg %p49
        $region42: #{tpu_custom_call.1} parent=39 // pred_check_branch
          %256 = sbr.rel (%p254) target = $region44
        $region43: #{tpu_custom_call.1} parent=39 // pred_region
          %s257 = sand.u32 %s39, 1
          %s258 = sand.u32 %s39, 1
          %s259 = smul.addr %s258, 8
          %s260 = scalar_lea.vmem [#allocation3], %s259
          %s261 = smul.u32 2, %s22
          %s262 = smul.addr %s261, 2
          %s263 = sadd.s32 %s23, %s262
          %s264 = smul.addr %s263, 4
          %s265 = scalar_lea.vmem %s0, %s264
          // Predicated region
          $region45: #{tpu_custom_call.1} parent=43 // pred_check
            _
          $region46: #{tpu_custom_call.1} parent=43 // pred_check_branch
            %267 = sbr.rel (0) target = $region48
          $region47: #{tpu_custom_call.1} parent=43 // pred_region
            // Predicated region
            $region49: #{tpu_custom_call.1} parent=47 // pred_check
              _
            $region50: #{tpu_custom_call.1} parent=47 // pred_check_branch
              %269 = sbr.rel target = $region52
            $region51: #{tpu_custom_call.1} parent=47 // pred_region
              // Predicated region
              $region64: #{tpu_custom_call.1} parent=51 // pred_check
                _
              $region65: #{tpu_custom_call.1} parent=51 // pred_check_branch
                %287 = sbr.rel (0) target = $region67
              $region66: #{tpu_custom_call.1} parent=51 // pred_region
                loop: start=0, step=1, limit=1
                $region68: #{tpu_custom_call.1} parent=66 // loop_pre_header
                  _
                $region69: #{tpu_custom_call.1} parent=66 // loop_header
                  %s289 = sphi 0, %s293
                  %p290 = scmp.ge.s32.totalorder %s289, 1
                  %s294 = sphi %s265, %s265
                  %s295 = sphi %s260, %s260
                $region70: #{tpu_custom_call.1} parent=66 // loop_header_branch
                  %292 = sbr.rel (%p290) target = $region74
                $region71: #{tpu_custom_call.1} parent=66 // loop_body
                  _
                $region72: #{tpu_custom_call.1} parent=66 // loop_footer
                  %s293 = sadd.s32 1, %s289
                $region73: #{tpu_custom_call.1} parent=66 // loop_footer_branch
                  %288 = sbr.rel target = $region69
                $region74: #{tpu_custom_call.1} parent=66 // loop_exit
                  _
                %s297 = ssub.s32 16, 1
                loop: start=0, step=1, limit=1
                $region75: #{tpu_custom_call.1} parent=66 // loop_pre_header
                  _
                $region76: #{tpu_custom_call.1} parent=66 // loop_header
                  %s299 = sphi 0, %s303
                  %p300 = scmp.ge.s32.totalorder %s299, 1
                  %s304 = sphi %s265, %s265
                  %s305 = sphi %s260, %s260
                $region77: #{tpu_custom_call.1} parent=66 // loop_header_branch
                  %302 = sbr.rel (%p300) target = $region81
                $region78: #{tpu_custom_call.1} parent=66 // loop_body
                  %v306 = vld [vmem:[%s304] sm:%s297]
                  %307 = vst [vmem:[%s305] sm:%s297] %v306
                  %v308 = vld [vmem:[%s304 + $0x8] sm:%s297]
                  %309 = vst [vmem:[%s305 + $0x4] sm:%s297] %v308
                $region79: #{tpu_custom_call.1} parent=66 // loop_footer
                  %s303 = sadd.s32 1, %s299
                $region80: #{tpu_custom_call.1} parent=66 // loop_footer_branch
                  %298 = sbr.rel target = $region76
                $region81: #{tpu_custom_call.1} parent=66 // loop_exit
                  _
              $region67: #{tpu_custom_call.1} parent=51 // pred_fallthru
                _
            $region52: #{tpu_custom_call.1} parent=47 // pred_fallthru
              _
            // Predicated region
            $region53: #{tpu_custom_call.1} parent=47 // pred_check
              _
            $region54: #{tpu_custom_call.1} parent=47 // pred_check_branch
              %271 = sbr.rel (0) target = $region56
            $region55: #{tpu_custom_call.1} parent=47 // pred_region
              %s273 = ssub.s32 16, 1
              loop: start=0, step=1, limit=1
              $region57: #{tpu_custom_call.1} parent=55 // loop_pre_header
                _
              $region58: #{tpu_custom_call.1} parent=55 // loop_header
                %s275 = sphi 0, %s279
                %p276 = scmp.ge.s32.totalorder %s275, 1
                %s280 = sphi %s265, %s265
                %s281 = sphi %s260, %s260
              $region59: #{tpu_custom_call.1} parent=55 // loop_header_branch
                %278 = sbr.rel (%p276) target = $region63
              $region60: #{tpu_custom_call.1} parent=55 // loop_body
                %v282 = vld [vmem:[%s280] sm:%s273]
                %283 = vst [vmem:[%s281] sm:%s273] %v282
                %v284 = vld [vmem:[%s280 + $0x8] sm:%s273]
                %285 = vst [vmem:[%s281 + $0x4] sm:%s273] %v284
              $region61: #{tpu_custom_call.1} parent=55 // loop_footer
                %s279 = sadd.s32 1, %s275
              $region62: #{tpu_custom_call.1} parent=55 // loop_footer_branch
                %274 = sbr.rel target = $region58
              $region63: #{tpu_custom_call.1} parent=55 // loop_exit
                _
            $region56: #{tpu_custom_call.1} parent=47 // pred_fallthru
              _
          $region48: #{tpu_custom_call.1} parent=43 // pred_fallthru
            _
          %310 = vnop
        $region44: #{tpu_custom_call.1} parent=39 // pred_fallthru
          _
      $region40: #{tpu_custom_call.1} parent=5 // pred_fallthru
        _
      %p311 = scmp.le.s32.totalorder 1, %s15
      %p312 = scmp.lt.s32.totalorder %s15, 3
      %p313 = pnand %p311, %p312
      %p314 = pneg %p313
      // Predicated region
      $region82: #{tpu_custom_call.1} parent=5 // pred_check
        _
      $region83: #{tpu_custom_call.1} parent=5 // pred_check_branch
        %316 = sbr.rel (%p313) target = $region85
      $region84: #{tpu_custom_call.1} parent=5 // pred_region
        %s317 = ssub.s32 %s15, 1
        %s318 = sand.u32 %s42, 1
        %s319 = sand.u32 %s42, 1
        %s320 = smul.addr %s319, 8
        %s321 = scalar_lea.vmem [#allocation3], %s320
        // Predicated region
        $region86: #{tpu_custom_call.1} parent=84 // pred_check
          %p322 = pneg %p55
        $region87: #{tpu_custom_call.1} parent=84 // pred_check_branch
          %324 = sbr.rel (%p322) target = $region89
        $region88: #{tpu_custom_call.1} parent=84 // pred_region
          _
        $region89: #{tpu_custom_call.1} parent=84 // pred_fallthru
          _
        // Predicated region
        $region90: #{tpu_custom_call.1} parent=84 // pred_check
          %p325 = pneg %p118
        $region91: #{tpu_custom_call.1} parent=84 // pred_check_branch
          %327 = sbr.rel (%p325) target = $region93
        $region92: #{tpu_custom_call.1} parent=84 // pred_region
          %328 = dma.done [#allocation5], 256
        $region93: #{tpu_custom_call.1} parent=84 // pred_fallthru
          _
        %s329 = sand.u32 %s42, 1
        %s330 = sand.u32 %s42, 1
        %s331 = smul.addr %s330, 8
        %s332 = scalar_lea.vmem [#allocation3], %s331
        %p333 = pneg %p55
        %p334 = pneg %p52
        %p335 = pneg %p76
        %p336 = pneg %p73
        %p337 = pneg %p97
        %p338 = pneg %p94
        %p339 = pneg %p118
        %p340 = pneg %p115
        %p341 = pneg %p139
        %p342 = pneg %p136
        %p343 = pneg %p160
        %p344 = pneg %p157
        %p345 = pneg %p181
        %p346 = pneg %p178
        %p347 = pneg %p207
        %p348 = pneg %p204
        %s349 = smul.u32 2, %s24
        %p351 = scmp.eq.s32.totalorder %s25, 0
        // Predicated region
        $region94: #{tpu_custom_call.1} parent=84 // pred_check
          %p352 = pneg %p351
        $region95: #{tpu_custom_call.1} parent=84 // pred_check_branch
          %354 = sbr.rel (%p352) target = $region97
        $region96: #{tpu_custom_call.1} parent=84 // pred_region
          %vm355 = vcmask 15360
          %356 = vst.msk [vmem:[#allocation2] sm:$0xff] %vm355, 0.0
          %357 = vst.msk [vmem:[#allocation2 + $0x8] sm:$0xff] %vm355, 0.0
          %358 = vst.msk [vmem:[#allocation2 + $0x10] sm:$0xff] %vm355, 0.0
          %359 = vst.msk [vmem:[#allocation2 + $0x18] sm:$0xff] %vm355, 0.0
        $region97: #{tpu_custom_call.1} parent=84 // pred_fallthru
          _
        %v360 = vld [vmem:[%s1] sm:$0xf]
        %v361 = vld [vmem:[%s1 + $0x4] sm:$0xf]
        %v362 = vld [vmem:[%s1 + $0x8] sm:$0xf]
        %v363 = vld [vmem:[%s1 + $0xc] sm:$0xf]
        %v364 = vld [vmem:[%s2] sm:$0xff]
        %v365 = vld [vmem:[%s2 + $0x8] sm:$0xff]
        %v366 = vld [vmem:[%s2 + $0x10] sm:$0xff]
        %v367 = vld [vmem:[%s2 + $0x18] sm:$0xff]
        %v368 = vld [vmem:[%s321] sm:$0xf]
        %v369 = vpack.c.bf16 %v368, %v368
        %371 = vset.pattern.permute.xlu0 0
        %372 = vperm.xlu0 %371, %v364
        %v373 = vpop.permute.xlu0 %372
        %376 = vset.pattern.permute.xlu0 0
        %377 = vperm.xlu0 %376, %v365
        %v378 = vpop.permute.xlu0 %377
        %381 = vset.pattern.permute.xlu0 0
        %382 = vperm.xlu0 %381, %v366
        %v383 = vpop.permute.xlu0 %382
        %386 = vset.pattern.permute.xlu0 0
        %387 = vperm.xlu0 %386, %v367
        %v388 = vpop.permute.xlu0 %387
        %v394 = vunpack.c.l.b16 %v360
        %v395 = vunpack.c.l.b16 %v361
        %v396 = vunpack.c.l.b16 %v362
        %v397 = vunpack.c.l.b16 %v363
        %v398 = vpack.c.b16 %v395, %v394
        %v399 = vpack.c.b16 %v397, %v396
        %vm400 = vcmask 31744
        %v402 = vsel %vm400, %v398, 0
        %v405 = vsel %vm400, %v399, 0
        %vm407 = vcmask 1041408
        %v409 = vsel %vm407, %v369, 0
        %411 = vmatprep.subr.bf16.mxu0 0
        %412 = vmatpush1.bf16.msra.mxu0 0
        %413 = vmatprep.subr.bf16.mxu0 0
        %414 = vmatpush1.bf16.msra.mxu0 0
        %415 = vmatprep.subr.bf16.mxu0 0
        %416 = vmatpush1.bf16.msra.mxu0 0
        %417 = vmatprep.subr.bf16.mxu0 0
        %418 = vmatpush1.bf16.msra.mxu0 0
        %419 = vmatprep.subr.bf16.mxu0 0
        %420 = vmatpush1.bf16.msra.mxu0 0
        %421 = vmatprep.subr.bf16.mxu0 0
        %422 = vmatpush1.bf16.msra.mxu0 0
        %423 = vmatprep.subr.bf16.mxu0 0
        %424 = vmatpush1.bf16.msra.mxu0 0
        %425 = vmatprep.subr.bf16.mxu0 0
        %426 = vmatpush1.bf16.msra.mxu0 %v409
        %427 = vmatprep.subr.bf16.mxu0 0
        %428 = vmatpush2.bf16.msra.mxu0 0
        %429 = vmatprep.subr.bf16.mxu0 0
        %430 = vmatpush2.bf16.msra.mxu0 0
        %431 = vmatprep.subr.bf16.mxu0 0
        %432 = vmatpush2.bf16.msra.mxu0 0
        %433 = vmatprep.subr.bf16.mxu0 0
        %434 = vmatpush2.bf16.msra.mxu0 0
        %435 = vmatprep.subr.bf16.mxu0 0
        %436 = vmatpush2.bf16.msra.mxu0 0
        %437 = vmatprep.subr.bf16.mxu0 0
        %438 = vmatpush2.bf16.msra.mxu0 0
        %439 = vmatprep.subr.bf16.mxu0 0
        %440 = vmatpush2.bf16.msra.mxu0 0
        %441 = vmatprep.subr.bf16.mxu0 0
        %442 = vmatpush2.bf16.msra.mxu0 0
        %443 = vmatprep.mubr.bf16.mxu0 0
        %444 = vmatmul.mubr.bf16.gmra.mxu0 %v402
        %v445 = vpop.f32.mrf.mxu0
        %v446 = vadd.f32 %v373, %v445
        %v447 = vpop.f32.mrf.mxu0
        %v448 = vpop.f32.mrf.mxu0
        %v449 = vadd.f32 %v378, %v448
        %v450 = vpop.f32.mrf.mxu0
        %451 = vmatprep.mubr.bf16.mxu0 0
        %452 = vmatmul.mubr.bf16.gmra.mxu0 %v405
        %v453 = vpop.f32.mrf.mxu0
        %v454 = vadd.f32 %v383, %v453
        %v455 = vpop.f32.mrf.mxu0
        %v456 = vpop.f32.mrf.mxu0
        %v457 = vadd.f32 %v388, %v456
        %v458 = vpop.f32.mrf.mxu0
        %459 = vdwg.mxu0
        %v460 = vmax.f32 %v446, 0.0
        %v461 = vmax.f32 %v449, 0.0
        %v462 = vmax.f32 %v454, 0.0
        %v463 = vmax.f32 %v457, 0.0
        %v464 = vld [vmem:[#allocation2] sm:$0xff]
        %v465 = vld [vmem:[#allocation2 + $0x8] sm:$0xff]
        %v466 = vld [vmem:[#allocation2 + $0x10] sm:$0xff]
        %v467 = vld [vmem:[#allocation2 + $0x18] sm:$0xff]
        %468 = vadd.xlane.f32.xlu0 %v460
        %v469 = vpop.xlane.xlu0 %468
        %470 = vadd.xlane.f32.xlu0 %v461
        %v471 = vpop.xlane.xlu0 %470
        %472 = vadd.xlane.f32.xlu0 %v462
        %v473 = vpop.xlane.xlu0 %472
        %474 = vadd.xlane.f32.xlu0 %v463
        %v475 = vpop.xlane.xlu0 %474
        %v476 = vadd.f32 %v464, %v469
        %v477 = vadd.f32 %v465, %v471
        %v478 = vadd.f32 %v466, %v473
        %v479 = vadd.f32 %v467, %v475
        %vm480 = vcmask 7168
        %481 = vst.msk [vmem:[#allocation2] sm:$0xff] %vm480, %v476
        %482 = vst.msk [vmem:[#allocation2 + $0x8] sm:$0xff] %vm480, %v477
        %483 = vst.msk [vmem:[#allocation2 + $0x10] sm:$0xff] %vm480, %v478
        %484 = vst.msk [vmem:[#allocation2 + $0x18] sm:$0xff] %vm480, %v479
        %s485 = scalar_lea.vmem %s321, 4 [#allocation3]
        %v486 = vld [vmem:[%s485] sm:$0xf]
        %v487 = vpack.c.bf16 %v486, %v486
        %v489 = vsel %vm407, %v487, 0
        %491 = vmatprep.subr.bf16.mxu0 0
        %492 = vmatpush1.bf16.msra.mxu0 0
        %493 = vmatprep.subr.bf16.mxu0 0
        %494 = vmatpush1.bf16.msra.mxu0 0
        %495 = vmatprep.subr.bf16.mxu0 0
        %496 = vmatpush1.bf16.msra.mxu0 0
        %497 = vmatprep.subr.bf16.mxu0 0
        %498 = vmatpush1.bf16.msra.mxu0 0
        %499 = vmatprep.subr.bf16.mxu0 0
        %500 = vmatpush1.bf16.msra.mxu0 0
        %501 = vmatprep.subr.bf16.mxu0 0
        %502 = vmatpush1.bf16.msra.mxu0 0
        %503 = vmatprep.subr.bf16.mxu0 0
        %504 = vmatpush1.bf16.msra.mxu0 0
        %505 = vmatprep.subr.bf16.mxu0 0
        %506 = vmatpush1.bf16.msra.mxu0 %v489
        %507 = vmatprep.subr.bf16.mxu0 0
        %508 = vmatpush2.bf16.msra.mxu0 0
        %509 = vmatprep.subr.bf16.mxu0 0
        %510 = vmatpush2.bf16.msra.mxu0 0
        %511 = vmatprep.subr.bf16.mxu0 0
        %512 = vmatpush2.bf16.msra.mxu0 0
        %513 = vmatprep.subr.bf16.mxu0 0
        %514 = vmatpush2.bf16.msra.mxu0 0
        %515 = vmatprep.subr.bf16.mxu0 0
        %516 = vmatpush2.bf16.msra.mxu0 0
        %517 = vmatprep.subr.bf16.mxu0 0
        %518 = vmatpush2.bf16.msra.mxu0 0
        %519 = vmatprep.subr.bf16.mxu0 0
        %520 = vmatpush2.bf16.msra.mxu0 0
        %521 = vmatprep.subr.bf16.mxu0 0
        %522 = vmatpush2.bf16.msra.mxu0 0
        %523 = vmatprep.mubr.bf16.mxu0 0
        %524 = vmatmul.mubr.bf16.gmra.mxu0 %v402
        %v525 = vpop.f32.mrf.mxu0
        %v526 = vadd.f32 %v373, %v525
        %v527 = vpop.f32.mrf.mxu0
        %v528 = vpop.f32.mrf.mxu0
        %v529 = vadd.f32 %v378, %v528
        %v530 = vpop.f32.mrf.mxu0
        %531 = vmatprep.mubr.bf16.mxu0 0
        %532 = vmatmul.mubr.bf16.gmra.mxu0 %v405
        %v533 = vpop.f32.mrf.mxu0
        %v534 = vadd.f32 %v383, %v533
        %v535 = vpop.f32.mrf.mxu0
        %v536 = vpop.f32.mrf.mxu0
        %v537 = vadd.f32 %v388, %v536
        %v538 = vpop.f32.mrf.mxu0
        %539 = vdwg.mxu0
        %v540 = vmax.f32 %v526, 0.0
        %v541 = vmax.f32 %v529, 0.0
        %v542 = vmax.f32 %v534, 0.0
        %v543 = vmax.f32 %v537, 0.0
        %v544 = vld [vmem:[#allocation2] sm:$0xff]
        %v545 = vld [vmem:[#allocation2 + $0x8] sm:$0xff]
        %v546 = vld [vmem:[#allocation2 + $0x10] sm:$0xff]
        %v547 = vld [vmem:[#allocation2 + $0x18] sm:$0xff]
        %548 = vadd.xlane.f32.xlu0 %v540
        %v549 = vpop.xlane.xlu0 %548
        %550 = vadd.xlane.f32.xlu0 %v541
        %v551 = vpop.xlane.xlu0 %550
        %552 = vadd.xlane.f32.xlu0 %v542
        %v553 = vpop.xlane.xlu0 %552
        %554 = vadd.xlane.f32.xlu0 %v543
        %v555 = vpop.xlane.xlu0 %554
        %v556 = vadd.f32 %v544, %v549
        %v557 = vadd.f32 %v545, %v551
        %v558 = vadd.f32 %v546, %v553
        %v559 = vadd.f32 %v547, %v555
        %vm560 = vcmask 15368
        %561 = vst.msk [vmem:[#allocation2] sm:$0xff] %vm560, %v556
        %562 = vst.msk [vmem:[#allocation2 + $0x8] sm:$0xff] %vm560, %v557
        %563 = vst.msk [vmem:[#allocation2 + $0x10] sm:$0xff] %vm560, %v558
        %564 = vst.msk [vmem:[#allocation2 + $0x18] sm:$0xff] %vm560, %v559
        %p565 = scmp.eq.s32.totalorder %s25, 1
        // Predicated region
        $region98: #{tpu_custom_call.1} parent=84 // pred_check
          %p566 = pneg %p565
        $region99: #{tpu_custom_call.1} parent=84 // pred_check_branch
          %568 = sbr.rel (%p566) target = $region101
        $region100: #{tpu_custom_call.1} parent=84 // pred_region
          %v569 = vld [vmem:[#allocation2] sm:$0xff]
          %v570 = vld [vmem:[#allocation2 + $0x8] sm:$0xff]
          %v571 = vld [vmem:[#allocation2 + $0x10] sm:$0xff]
          %v572 = vld [vmem:[#allocation2 + $0x18] sm:$0xff]
          %v573 = vmul.f32 %v569, 0.00390625
          %v574 = vmul.f32 %v570, 0.00390625
          %v575 = vmul.f32 %v571, 0.00390625
          %v576 = vmul.f32 %v572, 0.00390625
          %v577 = vpack.c.bf16 %v574, %v573
          %v578 = vpack.c.bf16 %v576, %v575
          %v579 = vld [vmem:[#allocation4] sm:$0xf]
          %v580 = vld [vmem:[#allocation4 + $0x4] sm:$0xf]
          %v581 = vld [vmem:[#allocation4 + $0x8] sm:$0xf]
          %v582 = vld [vmem:[#allocation4 + $0xc] sm:$0xf]
          %v583 = vld [vmem:[%s4] sm:$0x1]
          %v585 = vlaneseq
          %v586 = vshrl.u32 %v585, 7
          %v587 = vsub.s32 0, %v586
          %v588 = vrot.slane %v583, %v587
          %590 = vxpose.xlu0.c.b16.start [1/8] %v577, 128
          %591 = vxpose.xlu0.c.b16.cont [2/8] %v578, 128
          %592 = vxpose.xlu0.c.b16.cont [3/8] 0, 128
          %593 = vxpose.xlu0.c.b16.cont [4/8] 0, 128
          %594 = vxpose.xlu0.c.b16.cont [5/8] 0, 128
          %595 = vxpose.xlu0.c.b16.cont [6/8] 0, 128
          %596 = vxpose.xlu0.c.b16.cont [7/8] 0, 128
          %597 = vxpose.xlu0.c.b16.end [8/8] 0, 128
          %v598 = vpop.trf.xlu0
          %v599 = vpop.trf.xlu0
          %v600 = vpop.trf.xlu0
          %v601 = vpop.trf.xlu0
          %v602 = vpop.trf.xlu0
          %v603 = vpop.trf.xlu0
          %v604 = vpop.trf.xlu0
          %v605 = vpop.trf.xlu0
          %v610 = vunpack.c.l.b16 %v579
          %v611 = vunpack.c.l.b16 %v580
          %v612 = vunpack.c.l.b16 %v581
          %v613 = vunpack.c.l.b16 %v582
          %v614 = vpack.c.b16 %v611, %v610
          %v615 = vpack.c.b16 %v613, %v612
          %vm618 = vcmask 261120
          %v620 = vsel %vm618, %v598, 0
          %622 = vmatprep.subr.bf16.mxu0 0
          %623 = vmatpush1.bf16.msra.mxu0 0
          %624 = vmatprep.subr.bf16.mxu0 0
          %625 = vmatpush1.bf16.msra.mxu0 0
          %626 = vmatprep.subr.bf16.mxu0 0
          %627 = vmatpush1.bf16.msra.mxu0 0
          %628 = vmatprep.subr.bf16.mxu0 0
          %629 = vmatpush1.bf16.msra.mxu0 0
          %630 = vmatprep.subr.bf16.mxu0 0
          %631 = vmatpush1.bf16.msra.mxu0 0
          %632 = vmatprep.subr.bf16.mxu0 0
          %633 = vmatpush1.bf16.msra.mxu0 0
          %634 = vmatprep.subr.bf16.mxu0 0
          %635 = vmatpush1.bf16.msra.mxu0 %v615
          %636 = vmatprep.subr.bf16.mxu0 0
          %637 = vmatpush1.bf16.msra.mxu0 %v614
          %638 = vmatprep.subr.bf16.mxu0 0
          %639 = vmatpush2.bf16.msra.mxu0 0
          %640 = vmatprep.subr.bf16.mxu0 0
          %641 = vmatpush2.bf16.msra.mxu0 0
          %642 = vmatprep.subr.bf16.mxu0 0
          %643 = vmatpush2.bf16.msra.mxu0 0
          %644 = vmatprep.subr.bf16.mxu0 0
          %645 = vmatpush2.bf16.msra.mxu0 0
          %646 = vmatprep.subr.bf16.mxu0 0
          %647 = vmatpush2.bf16.msra.mxu0 0
          %648 = vmatprep.subr.bf16.mxu0 0
          %649 = vmatpush2.bf16.msra.mxu0 0
          %650 = vmatprep.subr.bf16.mxu0 0
          %651 = vmatpush2.bf16.msra.mxu0 0
          %652 = vmatprep.subr.bf16.mxu0 0
          %653 = vmatpush2.bf16.msra.mxu0 0
          %654 = vmatprep.mubr.bf16.mxu0 0
          %655 = vmatmul.mubr.bf16.gmra.mxu0 %v620
          %v656 = vpop.f32.mrf.mxu0
          %v657 = vadd.f32 %v588, %v656
          %v658 = vpop.f32.mrf.mxu0
          %v659 = vpop.f32.mrf.mxu0
          %v660 = vpop.f32.mrf.mxu0
          %661 = vdwg.mxu0
          %v662 = vmax.f32 %v657, 0.0
          %v663 = vpack.c.bf16 %v662, %v662
          %v664 = vld [vmem:[%s5] sm:$0xf]
          %v665 = vld [vmem:[%s5 + $0x4] sm:$0xf]
          %v666 = vld [vmem:[%s5 + $0x8] sm:$0xf]
          %v667 = vld [vmem:[%s5 + $0xc] sm:$0xf]
          %v668 = vld [vmem:[%s5 + $0x10] sm:$0xf]
          %v669 = vld [vmem:[%s5 + $0x14] sm:$0xf]
          %v670 = vld [vmem:[%s5 + $0x18] sm:$0xf]
          %v671 = vld [vmem:[%s5 + $0x1c] sm:$0xf]
          %v672 = vld [vmem:[%s6] sm:$0x1]
          %v674 = vlaneseq
          %v675 = vshrl.u32 %v674, 7
          %v676 = vsub.s32 0, %v675
          %v677 = vrot.slane %v672, %v676
          %v687 = vunpack.c.l.b16 %v664
          %v688 = vunpack.c.l.b16 %v665
          %v689 = vunpack.c.l.b16 %v666
          %v690 = vunpack.c.l.b16 %v667
          %v691 = vunpack.c.l.b16 %v668
          %v692 = vunpack.c.l.b16 %v669
          %v693 = vunpack.c.l.b16 %v670
          %v694 = vunpack.c.l.b16 %v671
          %v695 = vpack.c.b16 %v688, %v687
          %v696 = vpack.c.b16 %v690, %v689
          %v697 = vpack.c.b16 %v692, %v691
          %v698 = vpack.c.b16 %v694, %v693
          %vm703 = vcmask 523264
          %v705 = vsel %vm703, %v663, 0
          %707 = vmatprep.subr.bf16.mxu0 0
          %708 = vmatpush1.bf16.msra.mxu0 0
          %709 = vmatprep.subr.bf16.mxu0 0
          %710 = vmatpush1.bf16.msra.mxu0 0
          %711 = vmatprep.subr.bf16.mxu0 0
          %712 = vmatpush1.bf16.msra.mxu0 0
          %713 = vmatprep.subr.bf16.mxu0 0
          %714 = vmatpush1.bf16.msra.mxu0 0
          %715 = vmatprep.subr.bf16.mxu0 0
          %716 = vmatpush1.bf16.msra.mxu0 %v698
          %717 = vmatprep.subr.bf16.mxu0 0
          %718 = vmatpush1.bf16.msra.mxu0 %v697
          %719 = vmatprep.subr.bf16.mxu0 0
          %720 = vmatpush1.bf16.msra.mxu0 %v696
          %721 = vmatprep.subr.bf16.mxu0 0
          %722 = vmatpush1.bf16.msra.mxu0 %v695
          %723 = vmatprep.subr.bf16.mxu0 0
          %724 = vmatpush2.bf16.msra.mxu0 0
          %725 = vmatprep.subr.bf16.mxu0 0
          %726 = vmatpush2.bf16.msra.mxu0 0
          %727 = vmatprep.subr.bf16.mxu0 0
          %728 = vmatpush2.bf16.msra.mxu0 0
          %729 = vmatprep.subr.bf16.mxu0 0
          %730 = vmatpush2.bf16.msra.mxu0 0
          %731 = vmatprep.subr.bf16.mxu0 0
          %732 = vmatpush2.bf16.msra.mxu0 0
          %733 = vmatprep.subr.bf16.mxu0 0
          %734 = vmatpush2.bf16.msra.mxu0 0
          %735 = vmatprep.subr.bf16.mxu0 0
          %736 = vmatpush2.bf16.msra.mxu0 0
          %737 = vmatprep.subr.bf16.mxu0 0
          %738 = vmatpush2.bf16.msra.mxu0 0
          %739 = vmatprep.mubr.bf16.mxu0 0
          %740 = vmatmul.mubr.bf16.gmra.mxu0 %v705
          %v741 = vpop.f32.mrf.mxu0
          %v742 = vadd.f32 %v677, %v741
          %v743 = vpop.f32.mrf.mxu0
          %v744 = vpop.f32.mrf.mxu0
          %v745 = vpop.f32.mrf.mxu0
          %746 = vdwg.mxu0
          %747 = vst [vmem:[#allocation7] sm:$0x3] %v742
        $region101: #{tpu_custom_call.1} parent=84 // pred_fallthru
          _
        // Predicated region
        $region102: #{tpu_custom_call.1} parent=84 // pred_check
          %p748 = pneg %p204
        $region103: #{tpu_custom_call.1} parent=84 // pred_check_branch
          %750 = sbr.rel (%p748) target = $region105
        $region104: #{tpu_custom_call.1} parent=84 // pred_region
          %s752 = ssub.s32 32, 32
          %753 = vsyncadd [#allocation6], %s752
          %s754 = smul.addr %s24, 32
          %s755 = scalar_lea.hbm %s7, %s754
          %s757 = sshll.u32 [#allocation7], 4
          %s758 = int_to_ptr.vmem [resolvable:$true] %s757
          %760 = dma.vmem_to_hbm [thread:$0]  %s758, 32, %s755, [#allocation6]
        $region105: #{tpu_custom_call.1} parent=84 // pred_fallthru
          _
        // Predicated region
        $region106: #{tpu_custom_call.1} parent=84 // pred_check
          %p761 = pneg %p204
        $region107: #{tpu_custom_call.1} parent=84 // pred_check_branch
          %763 = sbr.rel (%p761) target = $region109
        $region108: #{tpu_custom_call.1} parent=84 // pred_region
          %764 = dma.done [#allocation6], 32
        $region109: #{tpu_custom_call.1} parent=84 // pred_fallthru
          _
      $region85: #{tpu_custom_call.1} parent=5 // pred_fallthru
        _
      %p765 = scmp.le.s32.totalorder 2, %s15
      // Predicated region
      $region110: #{tpu_custom_call.1} parent=5 // pred_check
        %p766 = pneg %p765
      $region111: #{tpu_custom_call.1} parent=5 // pred_check_branch
        %768 = sbr.rel (%p766) target = $region113
      $region112: #{tpu_custom_call.1} parent=5 // pred_region
        %s769 = ssub.s32 %s15, 2
      $region113: #{tpu_custom_call.1} parent=5 // pred_fallthru
        _
    $region6: #{tpu_custom_call.1} parent=1 // loop_footer
      %s19 = sadd.s32 1, %s15
    $region7: #{tpu_custom_call.1} parent=1 // loop_footer_branch
      %14 = sbr.rel target = $region3
    $region8: #{tpu_custom_call.1} parent=1 // loop_exit
      _
    %770 = vsyncpa [#allocation5], 1
    %s771 = scalar_lea.sflag [#allocation5], 1
    %772 = vsyncpa %s771, 1
    %773 = vsyncpa [#allocation6], 1
    %s774 = scalar_lea.sflag [#allocation6], 1
    %775 = vsyncpa %s774, 1

</llo_original>
